<compile_context>
chip_gen: v6e
topology: v6e:2x2x1
jax: 0.10.0
libtpu: 0.0.40
codegen_flags: <defaults>
</compile_context>

<pallas_src>
import functools

import jax
import jax.numpy as jnp
from jax import lax
from jax.experimental import pallas as pl
from jax.experimental.pallas import tpu as pltpu


def _yolo_kernel(p_ref, o_ref, *, nG, stride, nA, anchor_w_px, anchor_h_px):
    # p_ref block: (TB, attrs, L)  [attrs on sublanes, grid cells on lanes]
    # o_ref block: (TB, L, attrs)  [attrs-last output, no wrapper transpose]
    x = p_ref[...].astype(jnp.float32)
    TB, attrs, L = x.shape
    HEAD = attrs if attrs < 8 else 8   # rows 0..4 need transforms; 8 keeps the
                                       # slice on a sublane-tile boundary

    head = x[:, :HEAD, :]

    # Attribute-row / grid-cell index tiles over the head only.
    r = lax.broadcasted_iota(jnp.int32, (1, HEAD, L), 1)
    col = lax.broadcasted_iota(jnp.int32, (1, HEAD, L), 2)
    if nG & (nG - 1) == 0:              # power-of-two feature map: bit ops
        gx = (col & (nG - 1)).astype(jnp.float32)
        gy = (col >> (nG.bit_length() - 1)).astype(jnp.float32)
    else:                               # general case: exact f32 div (ints << 2^24)
        colf = col.astype(jnp.float32)
        gy = jnp.floor(colf / float(nG))
        gx = colf - gy * float(nG)

    # One EUP exp per head element; sigmoid derived from it.
    # 1 - 1/(1+e) is inf-safe: e=inf -> 1, e=0 -> 0.
    ex = jnp.exp(head)
    sig = 1.0 - 1.0 / (1.0 + ex)

    # Anchor id per block row.  Blocks start at anchor boundaries (TB % nA == 0),
    # so row t within the block belongs to anchor t % nA.  Exact small-int float
    # math avoids vector integer div/mod.
    t = lax.broadcasted_iota(jnp.int32, (TB, 1, 1), 0).astype(jnp.float32)
    a = t - jnp.floor(t / float(nA)) * float(nA)
    aw = jnp.full((TB, 1, 1), anchor_w_px[0], dtype=jnp.float32)
    ah = jnp.full((TB, 1, 1), anchor_h_px[0], dtype=jnp.float32)
    for k in range(1, nA):
        aw = jnp.where(a == float(k), anchor_w_px[k], aw)
        ah = jnp.where(a == float(k), anchor_h_px[k], ah)

    # row 0: sigmoid(tx)*stride + gx*stride     row 1: sigmoid(ty)*stride + gy*stride
    # row 2: exp(tw)*anchor_w_px                row 3: exp(th)*anchor_h_px
    # row 4: sigmoid(conf)                      rows 5..HEAD-1: passthrough
    is_xy = r < 2
    is_wh = (r >= 2) & (r < 4)
    core = jnp.where(is_xy | (r == 4), sig, jnp.where(is_wh, ex, head))
    scale = jnp.where(is_xy, jnp.float32(stride),
                      jnp.where(r == 2, aw, jnp.where(r == 3, ah, 1.0)))
    add = jnp.where(r == 0, gx, jnp.where(r == 1, gy, 0.0)) * jnp.float32(stride)
    head_out = core * scale + add

    head_t = jnp.transpose(head_out, (0, 2, 1)).astype(o_ref.dtype)
    if attrs > HEAD:
        o_ref[:, :, :HEAD] = head_t
        # Class logits past the head are a pure copy (no transcendentals/selects).
        o_ref[:, :, HEAD:] = jnp.transpose(x[:, HEAD:, :], (0, 2, 1)).astype(o_ref.dtype)
    else:
        o_ref[...] = head_t


def _pick_block_groups(n_groups, group_bytes, target_bytes=2 << 20, min_steps=4):
    """Batch groups per block; each group is nA rows of (attrs, L).

    Targets ~2 MiB input blocks (near HBM roofline per measured tile sweeps)
    while double-buffered in+out stays inside every generation's scoped VMEM
    (we also set vmem_limit_bytes explicitly).  Prefers >= min_steps grid steps
    so v7x's two TensorCores each get >= 2 pipelined steps, as long as blocks
    stay >= ~512 KiB.
    """
    tg = max(1, min(n_groups, target_bytes // max(1, group_bytes)))
    while (tg > 1 and (n_groups + tg - 1) // tg < min_steps
           and (tg - 1) * group_bytes >= (512 << 10)):
        tg -= 1
    return tg


def make_yolo_layer(anchors, nC, img_dim, anchor_idxs):
    """Returns a forward(p) callable matching YOLOLayer.forward(p, targets=None)."""
    nA = len(anchors)
    bbox_attrs = 5 + nC
    if anchor_idxs[0] == nA * 2:
        cfg_stride = 32
    elif anchor_idxs[0] == nA:
        cfg_stride = 16
    else:
        cfg_stride = 8

    def forward(p):
        bs, C, nG, nG2 = p.shape
        assert nG == nG2 and C == nA * bbox_attrs
        stride = float(img_dim) / float(nG)
        L = nG * nG
        N = bs * nA

        # Contiguous reshape (metadata only), equivalent to torch .view.
        p_r = p.reshape(N, bbox_attrs, L)

        # Per-anchor pixel scales (trace-time Python constants; no side input).
        anchor_w_px = tuple(float(a_w) / cfg_stride * stride for a_w, _ in anchors)
        anchor_h_px = tuple(float(a_h) / cfg_stride * stride for _, a_h in anchors)

        group_bytes = nA * bbox_attrs * L * 4
        TG = _pick_block_groups(bs, group_bytes)
        TB = TG * nA                      # anchor-aligned block rows

        kernel = functools.partial(
            _yolo_kernel, nG=nG, stride=stride, nA=nA,
            anchor_w_px=anchor_w_px, anchor_h_px=anchor_h_px)

        out = pl.pallas_call(
            kernel,
            out_shape=jax.ShapeDtypeStruct((N, L, bbox_attrs), jnp.float32),
            grid=(pl.cdiv(N, TB),),
            in_specs=[pl.BlockSpec((TB, bbox_attrs, L), lambda i: (i, 0, 0))],
            out_specs=pl.BlockSpec((TB, L, bbox_attrs), lambda i: (i, 0, 0)),
            compiler_params=pltpu.CompilerParams(
                dimension_semantics=("parallel",),
                vmem_limit_bytes=32 * 1024 * 1024,
            ),
        )(p_r)

        # (N, L, attrs) -> (bs, nA*nG*nG, 5+nC): contiguous reshape, no HBM pass.
        return out.reshape(bs, nA * L, bbox_attrs)

    return forward


def _reference_forward(p, scaled_anchors, nA, nC, img_dim):
    """Pure-JAX replica of the torch inference path, for validation."""
    bs, C, nG, _ = p.shape
    bbox_attrs = 5 + nC
    stride = img_dim / nG
    pr = p.astype(jnp.float32).reshape(bs, nA, bbox_attrs, nG, nG)
    pr = jnp.transpose(pr, (0, 1, 3, 4, 2))  # (bs, nA, nG, nG, attrs)
    grid_x = jnp.tile(jnp.arange(nG, dtype=jnp.float32), (nG, 1))[None, None]
    grid_y = jnp.tile(jnp.arange(nG, dtype=jnp.float32), (nG, 1)).T[None, None]
    anchor_w = scaled_anchors[:, 0].reshape(1, nA, 1, 1)
    anchor_h = scaled_anchors[:, 1].reshape(1, nA, 1, 1)
    x = jax.nn.sigmoid(pr[..., 0])
    y = jax.nn.sigmoid(pr[..., 1])
    width = jnp.exp(pr[..., 2]) * anchor_w
    height = jnp.exp(pr[..., 3]) * anchor_h
    pred_conf = pr[..., 4]
    pred_cls = pr[..., 5:]
    pred_boxes = jnp.stack([x + grid_x, y + grid_y, width, height], axis=-1)
    return jnp.concatenate(
        [
            pred_boxes.reshape(bs, -1, 4) * stride,
            jax.nn.sigmoid(pred_conf.reshape(bs, -1, 1)),
            pred_cls.reshape(bs, -1, nC),
        ],
        axis=-1,
    )


if __name__ == "__main__":
    # Small, deterministic config: nA=3 anchors, nC=3 classes, img_dim=512,
    # anchor_idxs[0] == nA*2 -> stride 32 -> nG = 16.
    anchors = [(116, 90), (156, 198), (373, 326)]
    nC = 3
    img_dim = 512
    anchor_idxs = (6, 7, 8)
    nA = len(anchors)
    bbox_attrs = 5 + nC
    bs, nG = 2, 16

    key = jax.random.PRNGKey(0)
    p = jax.random.normal(key, (bs, nA * bbox_attrs, nG, nG), dtype=jnp.float32)

    yolo = make_yolo_layer(anchors, nC, img_dim, anchor_idxs)
    out = yolo(p)
    out = jax.block_until_ready(out)

    scaled_anchors = jnp.asarray(
        [(a_w / 32.0, a_h / 32.0) for a_w, a_h in anchors], dtype=jnp.float32
    )
    ref = _reference_forward(p, scaled_anchors, nA, nC, img_dim)
    assert out.shape == (bs, nA * nG * nG, bbox_attrs), out.shape
    assert jnp.allclose(out, ref, atol=1e-4, rtol=1e-5), "mismatch vs reference"

    print("KERNEL_OK")
</pallas_src>

<mosaic_0001>
module attributes {stable_mosaic.version = 11 : i64} {
  func.func @_yolo_kernel(%arg0: i32, %arg1: memref<6x8x256xf32, #tpu.memory_space<vmem>>, %arg2: memref<6x256x8xf32, #tpu.memory_space<vmem>>) attributes {dimension_semantics = [#tpu.dimension_semantics<parallel>], iteration_bounds = array<i64: 1>, scalar_prefetch = 0 : i64, scratch_operands = 0 : i64, tpu.core_type = #tpu.core_type<tc>, window_params = [{transform_indices = @transform_0, window_bounds = array<i64: 6, 8, 256>}, {transform_indices = @transform_1, window_bounds = array<i64: 6, 256, 8>}]} {
    %c0 = arith.constant 0 : index
    %c0_0 = arith.constant 0 : index
    %c0_1 = arith.constant 0 : index
    %0 = vector.load %arg1[%c0, %c0_0, %c0_1] : memref<6x8x256xf32, #tpu.memory_space<vmem>>, vector<6x8x256xf32>
    %1 = tpu.iota {dimensions = array<i32: 1>} : vector<1x8x256xi32>
    %2 = tpu.iota {dimensions = array<i32: 2>} : vector<1x8x256xi32>
    %c15_i32 = arith.constant 15 : i32
    %3 = vector.broadcast %c15_i32 : i32 to vector<1x8x256xi32>
    %4 = arith.andi %2, %3 : vector<1x8x256xi32>
    %5 = arith.sitofp %4 : vector<1x8x256xi32> to vector<1x8x256xf32>
    %c4_i32 = arith.constant 4 : i32
    %6 = vector.broadcast %c4_i32 : i32 to vector<1x8x256xi32>
    %7 = arith.shrsi %2, %6 : vector<1x8x256xi32>
    %8 = arith.sitofp %7 : vector<1x8x256xi32> to vector<1x8x256xf32>
    %9 = math.exp %0 : vector<6x8x256xf32>
    %cst = arith.constant 1.000000e+00 : f32
    %10 = vector.broadcast %cst : f32 to vector<6x8x256xf32>
    %11 = arith.addf %10, %9 : vector<6x8x256xf32>
    %cst_2 = arith.constant 1.000000e+00 : f32
    %12 = vector.broadcast %cst_2 : f32 to vector<6x8x256xf32>
    %13 = arith.divf %12, %11 : vector<6x8x256xf32>
    %cst_3 = arith.constant 1.000000e+00 : f32
    %14 = vector.broadcast %cst_3 : f32 to vector<6x8x256xf32>
    %15 = arith.subf %14, %13 : vector<6x8x256xf32>
    %16 = tpu.iota {dimensions = array<i32: 0>} : vector<6x1x1xi32>
    %17 = arith.sitofp %16 : vector<6x1x1xi32> to vector<6x1x1xf32>
    %cst_4 = arith.constant 3.000000e+00 : f32
    %18 = vector.broadcast %cst_4 : f32 to vector<6x1x1xf32>
    %19 = arith.divf %17, %18 : vector<6x1x1xf32>
    %20 = math.floor %19 : vector<6x1x1xf32>
    %cst_5 = arith.constant 3.000000e+00 : f32
    %21 = vector.broadcast %cst_5 : f32 to vector<6x1x1xf32>
    %22 = arith.mulf %20, %21 : vector<6x1x1xf32>
    %23 = arith.subf %17, %22 : vector<6x1x1xf32>
    %cst_6 = arith.constant 1.160000e+02 : f32
    %24 = vector.broadcast %cst_6 : f32 to vector<6x1x1xf32>
    %cst_7 = arith.constant 9.000000e+01 : f32
    %25 = vector.broadcast %cst_7 : f32 to vector<6x1x1xf32>
    %cst_8 = arith.constant 1.000000e+00 : f32
    %26 = vector.broadcast %cst_8 : f32 to vector<6x1x1xf32>
    %27 = arith.cmpf oeq, %23, %26 : vector<6x1x1xf32>
    %cst_9 = arith.constant 1.560000e+02 : f32
    %28 = vector.broadcast %cst_9 : f32 to vector<6x1x1xf32>
    %29 = arith.select %27, %28, %24 : vector<6x1x1xi1>, vector<6x1x1xf32>
    %cst_10 = arith.constant 1.000000e+00 : f32
    %30 = vector.broadcast %cst_10 : f32 to vector<6x1x1xf32>
    %31 = arith.cmpf oeq, %23, %30 : vector<6x1x1xf32>
    %cst_11 = arith.constant 1.980000e+02 : f32
    %32 = vector.broadcast %cst_11 : f32 to vector<6x1x1xf32>
    %33 = arith.select %31, %32, %25 : vector<6x1x1xi1>, vector<6x1x1xf32>
    %cst_12 = arith.constant 2.000000e+00 : f32
    %34 = vector.broadcast %cst_12 : f32 to vector<6x1x1xf32>
    %35 = arith.cmpf oeq, %23, %34 : vector<6x1x1xf32>
    %cst_13 = arith.constant 3.730000e+02 : f32
    %36 = vector.broadcast %cst_13 : f32 to vector<6x1x1xf32>
    %37 = arith.select %35, %36, %29 : vector<6x1x1xi1>, vector<6x1x1xf32>
    %cst_14 = arith.constant 2.000000e+00 : f32
    %38 = vector.broadcast %cst_14 : f32 to vector<6x1x1xf32>
    %39 = arith.cmpf oeq, %23, %38 : vector<6x1x1xf32>
    %cst_15 = arith.constant 3.260000e+02 : f32
    %40 = vector.broadcast %cst_15 : f32 to vector<6x1x1xf32>
    %41 = arith.select %39, %40, %33 : vector<6x1x1xi1>, vector<6x1x1xf32>
    %c2_i32 = arith.constant 2 : i32
    %42 = vector.broadcast %c2_i32 : i32 to vector<1x8x256xi32>
    %43 = arith.cmpi slt, %1, %42 : vector<1x8x256xi32>
    %c2_i32_16 = arith.constant 2 : i32
    %44 = vector.broadcast %c2_i32_16 : i32 to vector<1x8x256xi32>
    %45 = arith.cmpi sge, %1, %44 : vector<1x8x256xi32>
    %c4_i32_17 = arith.constant 4 : i32
    %46 = vector.broadcast %c4_i32_17 : i32 to vector<1x8x256xi32>
    %47 = arith.cmpi slt, %1, %46 : vector<1x8x256xi32>
    %48 = arith.andi %45, %47 : vector<1x8x256xi1>
    %c4_i32_18 = arith.constant 4 : i32
    %49 = vector.broadcast %c4_i32_18 : i32 to vector<1x8x256xi32>
    %50 = arith.cmpi eq, %1, %49 : vector<1x8x256xi32>
    %51 = arith.ori %43, %50 : vector<1x8x256xi1>
    %52 = vector.shape_cast %48 : vector<1x8x256xi1> to vector<1x8x256xi1>
    %53 = vector.broadcast %52 : vector<1x8x256xi1> to vector<6x8x256xi1>
    %54 = arith.select %53, %9, %0 : vector<6x8x256xi1>, vector<6x8x256xf32>
    %55 = vector.shape_cast %51 : vector<1x8x256xi1> to vector<1x8x256xi1>
    %56 = vector.broadcast %55 : vector<1x8x256xi1> to vector<6x8x256xi1>
    %57 = arith.select %56, %15, %54 : vector<6x8x256xi1>, vector<6x8x256xf32>
    %c2_i32_19 = arith.constant 2 : i32
    %58 = vector.broadcast %c2_i32_19 : i32 to vector<1x8x256xi32>
    %59 = arith.cmpi eq, %1, %58 : vector<1x8x256xi32>
    %c3_i32 = arith.constant 3 : i32
    %60 = vector.broadcast %c3_i32 : i32 to vector<1x8x256xi32>
    %61 = arith.cmpi eq, %1, %60 : vector<1x8x256xi32>
    %cst_20 = arith.constant 1.000000e+00 : f32
    %62 = vector.shape_cast %61 : vector<1x8x256xi1> to vector<1x8x256xi1>
    %63 = vector.broadcast %62 : vector<1x8x256xi1> to vector<6x8x256xi1>
    %64 = vector.shape_cast %41 : vector<6x1x1xf32> to vector<6x1x1xf32>
    %65 = vector.broadcast %64 : vector<6x1x1xf32> to vector<6x8x256xf32>
    %66 = vector.broadcast %cst_20 : f32 to vector<6x8x256xf32>
    %67 = arith.select %63, %65, %66 : vector<6x8x256xi1>, vector<6x8x256xf32>
    %68 = vector.shape_cast %59 : vector<1x8x256xi1> to vector<1x8x256xi1>
    %69 = vector.broadcast %68 : vector<1x8x256xi1> to vector<6x8x256xi1>
    %70 = vector.shape_cast %37 : vector<6x1x1xf32> to vector<6x1x1xf32>
    %71 = vector.broadcast %70 : vector<6x1x1xf32> to vector<6x8x256xf32>
    %72 = arith.select %69, %71, %67 : vector<6x8x256xi1>, vector<6x8x256xf32>
    %cst_21 = arith.constant 3.200000e+01 : f32
    %73 = vector.shape_cast %43 : vector<1x8x256xi1> to vector<1x8x256xi1>
    %74 = vector.broadcast %73 : vector<1x8x256xi1> to vector<6x8x256xi1>
    %75 = vector.broadcast %cst_21 : f32 to vector<6x8x256xf32>
    %76 = arith.select %74, %75, %72 : vector<6x8x256xi1>, vector<6x8x256xf32>
    %c0_i32 = arith.constant 0 : i32
    %77 = vector.broadcast %c0_i32 : i32 to vector<1x8x256xi32>
    %78 = arith.cmpi eq, %1, %77 : vector<1x8x256xi32>
    %c1_i32 = arith.constant 1 : i32
    %79 = vector.broadcast %c1_i32 : i32 to vector<1x8x256xi32>
    %80 = arith.cmpi eq, %1, %79 : vector<1x8x256xi32>
    %cst_22 = arith.constant 0.000000e+00 : f32
    %81 = vector.broadcast %cst_22 : f32 to vector<1x8x256xf32>
    %82 = arith.select %80, %8, %81 : vector<1x8x256xi1>, vector<1x8x256xf32>
    %83 = arith.select %78, %5, %82 : vector<1x8x256xi1>, vector<1x8x256xf32>
    %cst_23 = arith.constant 3.200000e+01 : f32
    %84 = vector.broadcast %cst_23 : f32 to vector<1x8x256xf32>
    %85 = arith.mulf %83, %84 : vector<1x8x256xf32>
    %86 = arith.mulf %57, %76 : vector<6x8x256xf32>
    %87 = vector.broadcast %85 : vector<1x8x256xf32> to vector<6x8x256xf32>
    %88 = arith.addf %86, %87 : vector<6x8x256xf32>
    %89 = tpu.transpose %88, [0, 2, 1] : vector<6x8x256xf32> -> vector<6x256x8xf32>
    %c0_24 = arith.constant 0 : index
    %c0_25 = arith.constant 0 : index
    %c0_26 = arith.constant 0 : index
    %90 = vector.load %arg2[%c0_24, %c0_25, %c0_26] : memref<6x256x8xf32, #tpu.memory_space<vmem>>, vector<6x256x8xf32>
    tpu.vector_store %arg2[%c0_24, %c0_25, %c0_26], %89 {strides = array<i32>} : memref<6x256x8xf32, #tpu.memory_space<vmem>>, vector<6x256x8xf32>,
    return
  }
  func.func @transform_0(%arg0: i32) -> (i32, i32, i32) {
    %c0_i32 = arith.constant 0 : i32
    %c0_i32_0 = arith.constant 0 : i32
    %c0_i32_1 = arith.constant 0 : i32
    return %arg0, %c0_i32, %c0_i32_0 : i32, i32, i32
  }
  func.func @transform_1(%arg0: i32) -> (i32, i32, i32) {
    %c0_i32 = arith.constant 0 : i32
    %c0_i32_0 = arith.constant 0 : i32
    %c0_i32_1 = arith.constant 0 : i32
    return %arg0, %c0_i32, %c0_i32_0 : i32, i32, i32
  }
}

</mosaic_0001>

<llo_original>
// kernel: tpu_custom_call.1
$region0: #{tpu_custom_call.1}
  #allocation0 [shape = 'u32[]', space=smem, size = 0x4, offset = 0x4, fixed_abs, tag = 'smem constant byte address 0x4 - core index']
  #allocation1 [shape = 'u32[144,128]{1,0:T(1,128)}', space=vmem, size = 0x12000, scoped, tag = 'internal scratch']
  %s0 = inlined_call_operand.hbm [shape: f32[6,8,256], index: 0, kind: input, shape index: {}]
  %s1 = inlined_call_operand.vmem [shape: f32[6,256,8], index: 1, kind: output, shape index: {}]
  %s2 = sld [smem:[#allocation0]]
  $region18: #{tpu_custom_call.1} parent=0
    _
  %s4 = ssub.s32 1, %s2
  %s5 = scalar_select 0, %s4, %s2
  $region1: #{tpu_custom_call.1} parent=0
    #allocation2 [shape = 'u8[49152]{0}', space=vmem, size = 0xc000, scoped, tag = 'input window, operand 0, single buffered']
    #allocation3 [shape = 's32[1]{0}', space=sflag, size = 0x4, scoped, tag = 'scoped memory for tpu_custom_call.1']
    %6 = vsyncpa [#allocation3], 0
    // Predicated region
    $region2: #{tpu_custom_call.1} parent=1 // pred_check
      _
    $region3: #{tpu_custom_call.1} parent=1 // pred_check_branch
      %8 = sbr.rel (0) target = $region5
    $region4: #{tpu_custom_call.1} parent=1 // pred_region
      %s10 = ssub.s32 1536, 1536
      %11 = vsyncadd [#allocation3], %s10
      %s12 = sshll.u32 [#allocation2], 4
      %s13 = int_to_ptr.vmem [resolvable:$true] %s12
      %18 = dma.hbm_to_vmem [thread:$0]  %s0, 1536, %s13, [#allocation3], 256, 256, 16
    $region5: #{tpu_custom_call.1} parent=1 // pred_fallthru
      _
    // Predicated region
    $region6: #{tpu_custom_call.1} parent=1 // pred_check
      _
    $region7: #{tpu_custom_call.1} parent=1 // pred_check_branch
      %20 = sbr.rel (0) target = $region9
    $region8: #{tpu_custom_call.1} parent=1 // pred_region
      %21 = dma.done [#allocation3], 1536
    $region9: #{tpu_custom_call.1} parent=1 // pred_fallthru
      _
    %v22 = vld [vmem:[#allocation2] sm:$0xff]
    %v23 = vld [vmem:[#allocation2 + $0x8] sm:$0xff]
    %v24 = vld [vmem:[#allocation2 + $0x10] sm:$0xff]
    %v25 = vld [vmem:[#allocation2 + $0x18] sm:$0xff]
    %v26 = vld [vmem:[#allocation2 + $0x20] sm:$0xff]
    %v27 = vld [vmem:[#allocation2 + $0x28] sm:$0xff]
    %v28 = vld [vmem:[#allocation2 + $0x30] sm:$0xff]
    %v29 = vld [vmem:[#allocation2 + $0x38] sm:$0xff]
    %v30 = vld [vmem:[#allocation2 + $0x40] sm:$0xff]
    %v31 = vld [vmem:[#allocation2 + $0x48] sm:$0xff]
    %v32 = vld [vmem:[#allocation2 + $0x50] sm:$0xff]
    %v33 = vld [vmem:[#allocation2 + $0x58] sm:$0xff]
    %v34 = vlaneseq
    %v35 = vshrl.u32 %v34, 7
    %v36 = vlaneseq
    %v37 = vand.u32 %v36, 127
    %v38 = vadd.s32 %v37, 128
    %v39 = vand.u32 %v37, 15
    %v40 = vand.u32 %v38, 15
    %v41 = vcvt.s32.f32 %v39
    %v42 = vcvt.s32.f32 %v40
    %v43 = vshra.s32 %v37, 4
    %v44 = vshra.s32 %v38, 4
    %v45 = vcvt.s32.f32 %v43
    %v46 = vcvt.s32.f32 %v44
    %v47 = vmul.f32 %v22, 1.442695
    %v48 = vpow.pop %v47
    %v49 = vmul.f32 %v23, 1.442695
    %v50 = vpow.pop %v49
    %v51 = vmul.f32 %v24, 1.442695
    %v52 = vpow.pop %v51
    %v53 = vmul.f32 %v25, 1.442695
    %v54 = vpow.pop %v53
    %v55 = vmul.f32 %v26, 1.442695
    %v56 = vpow.pop %v55
    %v57 = vmul.f32 %v27, 1.442695
    %v58 = vpow.pop %v57
    %v59 = vmul.f32 %v28, 1.442695
    %v60 = vpow.pop %v59
    %v61 = vmul.f32 %v29, 1.442695
    %v62 = vpow.pop %v61
    %v63 = vmul.f32 %v30, 1.442695
    %v64 = vpow.pop %v63
    %v65 = vmul.f32 %v31, 1.442695
    %v66 = vpow.pop %v65
    %v67 = vmul.f32 %v32, 1.442695
    %v68 = vpow.pop %v67
    %v69 = vmul.f32 %v33, 1.442695
    %v70 = vpow.pop %v69
    %v71 = vadd.f32 %v48, 1.0
    %v72 = vadd.f32 %v50, 1.0
    %v73 = vadd.f32 %v52, 1.0
    %v74 = vadd.f32 %v54, 1.0
    %v75 = vadd.f32 %v56, 1.0
    %v76 = vadd.f32 %v58, 1.0
    %v77 = vadd.f32 %v60, 1.0
    %v78 = vadd.f32 %v62, 1.0
    %v79 = vadd.f32 %v64, 1.0
    %v80 = vadd.f32 %v66, 1.0
    %v81 = vadd.f32 %v68, 1.0
    %v82 = vadd.f32 %v70, 1.0
    %v83 = vrcp.pop %v71
    %v84 = vmul.f32 1.0, %v83
    %v85 = vrcp.pop %v72
    %v86 = vmul.f32 1.0, %v85
    %v87 = vrcp.pop %v73
    %v88 = vmul.f32 1.0, %v87
    %v89 = vrcp.pop %v74
    %v90 = vmul.f32 1.0, %v89
    %v91 = vrcp.pop %v75
    %v92 = vmul.f32 1.0, %v91
    %v93 = vrcp.pop %v76
    %v94 = vmul.f32 1.0, %v93
    %v95 = vrcp.pop %v77
    %v96 = vmul.f32 1.0, %v95
    %v97 = vrcp.pop %v78
    %v98 = vmul.f32 1.0, %v97
    %v99 = vrcp.pop %v79
    %v100 = vmul.f32 1.0, %v99
    %v101 = vrcp.pop %v80
    %v102 = vmul.f32 1.0, %v101
    %v103 = vrcp.pop %v81
    %v104 = vmul.f32 1.0, %v103
    %v105 = vrcp.pop %v82
    %v106 = vmul.f32 1.0, %v105
    %v107 = vsub.f32 1.0, %v84
    %v108 = vsub.f32 1.0, %v86
    %v109 = vsub.f32 1.0, %v88
    %v110 = vsub.f32 1.0, %v90
    %v111 = vsub.f32 1.0, %v92
    %v112 = vsub.f32 1.0, %v94
    %v113 = vsub.f32 1.0, %v96
    %v114 = vsub.f32 1.0, %v98
    %v115 = vsub.f32 1.0, %v100
    %v116 = vsub.f32 1.0, %v102
    %v117 = vsub.f32 1.0, %v104
    %v118 = vsub.f32 1.0, %v106
    %v119 = vcvt.s32.f32 0
    %v120 = vcvt.s32.f32 1
    %v121 = vcvt.s32.f32 2
    %v122 = vcvt.s32.f32 3
    %v123 = vcvt.s32.f32 4
    %v124 = vcvt.s32.f32 5
    %v125 = vrcp.pop 3.0
    %v126 = vmul.f32 %v119, %v125
    %v127 = vmul.f32 %v120, %v125
    %v128 = vmul.f32 %v121, %v125
    %v129 = vmul.f32 %v122, %v125
    %v130 = vmul.f32 %v123, %v125
    %v131 = vmul.f32 %v124, %v125
    %v132 = vfloor.f32 %v126
    %v133 = vfloor.f32 %v127
    %v134 = vfloor.f32 %v128
    %v135 = vfloor.f32 %v129
    %v136 = vfloor.f32 %v130
    %v137 = vfloor.f32 %v131
    %v138 = vmul.f32 %v132, 3.0
    %v139 = vmul.f32 %v133, 3.0
    %v140 = vmul.f32 %v134, 3.0
    %v141 = vmul.f32 %v135, 3.0
    %v142 = vmul.f32 %v136, 3.0
    %v143 = vmul.f32 %v137, 3.0
    %v144 = vsub.f32 %v119, %v138
    %v145 = vsub.f32 %v120, %v139
    %v146 = vsub.f32 %v121, %v140
    %v147 = vsub.f32 %v122, %v141
    %v148 = vsub.f32 %v123, %v142
    %v149 = vsub.f32 %v124, %v143
    %vm150 = vcmp.eq.f32.partialorder %v144, 1.0
    %vm151 = vcmp.eq.f32.partialorder %v145, 1.0
    %vm152 = vcmp.eq.f32.partialorder %v146, 1.0
    %vm153 = vcmp.eq.f32.partialorder %v147, 1.0
    %vm154 = vcmp.eq.f32.partialorder %v148, 1.0
    %vm155 = vcmp.eq.f32.partialorder %v149, 1.0
    %v156 = vsel %vm150, 156.0, 116.0
    %v157 = vsel %vm151, 156.0, 116.0
    %v158 = vsel %vm152, 156.0, 116.0
    %v159 = vsel %vm153, 156.0, 116.0
    %v160 = vsel %vm154, 156.0, 116.0
    %v161 = vsel %vm155, 156.0, 116.0
    %v162 = vsel %vm150, 198.0, 90.0
    %v163 = vsel %vm151, 198.0, 90.0
    %v164 = vsel %vm152, 198.0, 90.0
    %v165 = vsel %vm153, 198.0, 90.0
    %v166 = vsel %vm154, 198.0, 90.0
    %v167 = vsel %vm155, 198.0, 90.0
    %vm168 = vcmp.eq.f32.partialorder %v144, 2.0
    %vm169 = vcmp.eq.f32.partialorder %v145, 2.0
    %vm170 = vcmp.eq.f32.partialorder %v146, 2.0
    %vm171 = vcmp.eq.f32.partialorder %v147, 2.0
    %vm172 = vcmp.eq.f32.partialorder %v148, 2.0
    %vm173 = vcmp.eq.f32.partialorder %v149, 2.0
    %v174 = vsel %vm168, 373.0, %v156
    %v175 = vsel %vm169, 373.0, %v157
    %v176 = vsel %vm170, 373.0, %v158
    %v177 = vsel %vm171, 373.0, %v159
    %v178 = vsel %vm172, 373.0, %v160
    %v179 = vsel %vm173, 373.0, %v161
    %v180 = vsel %vm168, 326.0, %v162
    %v181 = vsel %vm169, 326.0, %v163
    %v182 = vsel %vm170, 326.0, %v164
    %v183 = vsel %vm171, 326.0, %v165
    %v184 = vsel %vm172, 326.0, %v166
    %v185 = vsel %vm173, 326.0, %v167
    %vm186 = vcmp.lt.s32.totalorder %v35, 2
    %vm187 = vcmp.ge.s32.totalorder %v35, 2
    %vm188 = vcmp.lt.s32.totalorder %v35, 4
    %vm189 = vmand %vm187, %vm188
    %vm190 = vcmp.eq.s32.totalorder %v35, 4
    %vm191 = vmor %vm186, %vm190
    %v192 = vsel %vm189, 1, 0
    %vm193 = vcmp.eq.s32.totalorder %v192, 1
    %v194 = vsel %vm193, %v48, %v22
    %v195 = vsel %vm193, %v50, %v23
    %v196 = vsel %vm193, %v52, %v24
    %v197 = vsel %vm193, %v54, %v25
    %v198 = vsel %vm193, %v56, %v26
    %v199 = vsel %vm193, %v58, %v27
    %v200 = vsel %vm193, %v60, %v28
    %v201 = vsel %vm193, %v62, %v29
    %v202 = vsel %vm193, %v64, %v30
    %v203 = vsel %vm193, %v66, %v31
    %v204 = vsel %vm193, %v68, %v32
    %v205 = vsel %vm193, %v70, %v33
    %v206 = vsel %vm191, 1, 0
    %vm207 = vcmp.eq.s32.totalorder %v206, 1
    %v208 = vsel %vm207, %v107, %v194
    %v209 = vsel %vm207, %v108, %v195
    %v210 = vsel %vm207, %v109, %v196
    %v211 = vsel %vm207, %v110, %v197
    %v212 = vsel %vm207, %v111, %v198
    %v213 = vsel %vm207, %v112, %v199
    %v214 = vsel %vm207, %v113, %v200
    %v215 = vsel %vm207, %v114, %v201
    %v216 = vsel %vm207, %v115, %v202
    %v217 = vsel %vm207, %v116, %v203
    %v218 = vsel %vm207, %v117, %v204
    %v219 = vsel %vm207, %v118, %v205
    %vm220 = vcmp.eq.s32.totalorder %v35, 2
    %vm221 = vcmp.eq.s32.totalorder %v35, 3
    %v222 = vsel %vm221, 1, 0
    %vm223 = vcmp.eq.s32.totalorder %v222, 1
    %v224 = vsel %vm223, %v180, 1.0
    %v225 = vsel %vm223, %v181, 1.0
    %v226 = vsel %vm223, %v182, 1.0
    %v227 = vsel %vm223, %v183, 1.0
    %v228 = vsel %vm223, %v184, 1.0
    %v229 = vsel %vm223, %v185, 1.0
    %v230 = vsel %vm220, 1, 0
    %vm231 = vcmp.eq.s32.totalorder %v230, 1
    %v232 = vsel %vm231, %v174, %v224
    %v233 = vsel %vm231, %v175, %v225
    %v234 = vsel %vm231, %v176, %v226
    %v235 = vsel %vm231, %v177, %v227
    %v236 = vsel %vm231, %v178, %v228
    %v237 = vsel %vm231, %v179, %v229
    %v238 = vsel %vm186, 1, 0
    %vm239 = vcmp.eq.s32.totalorder %v238, 1
    %v240 = vsel %vm239, 32.0, %v232
    %v241 = vsel %vm239, 32.0, %v233
    %v242 = vsel %vm239, 32.0, %v234
    %v243 = vsel %vm239, 32.0, %v235
    %v244 = vsel %vm239, 32.0, %v236
    %v245 = vsel %vm239, 32.0, %v237
    %vm246 = vcmp.eq.s32.totalorder %v35, 0
    %vm247 = vcmp.eq.s32.totalorder %v35, 1
    %v248 = vsel %vm247, %v45, 0.0
    %v249 = vsel %vm247, %v46, 0.0
    %v250 = vsel %vm246, %v41, %v248
    %v251 = vsel %vm246, %v42, %v249
    %v252 = vmul.f32 %v250, 32.0
    %v253 = vmul.f32 %v251, 32.0
    %v254 = vmul.f32 %v208, %v240
    %v255 = vmul.f32 %v209, %v240
    %v256 = vmul.f32 %v210, %v241
    %v257 = vmul.f32 %v211, %v241
    %v258 = vmul.f32 %v212, %v242
    %v259 = vmul.f32 %v213, %v242
    %v260 = vmul.f32 %v214, %v243
    %v261 = vmul.f32 %v215, %v243
    %v262 = vmul.f32 %v216, %v244
    %v263 = vmul.f32 %v217, %v244
    %v264 = vmul.f32 %v218, %v245
    %v265 = vmul.f32 %v219, %v245
    %v266 = vadd.f32 %v254, %v252
    %v267 = vadd.f32 %v255, %v253
    %v268 = vadd.f32 %v256, %v252
    %v269 = vadd.f32 %v257, %v253
    %v270 = vadd.f32 %v258, %v252
    %v271 = vadd.f32 %v259, %v253
    %v272 = vadd.f32 %v260, %v252
    %v273 = vadd.f32 %v261, %v253
    %v274 = vadd.f32 %v262, %v252
    %v275 = vadd.f32 %v263, %v253
    %v276 = vadd.f32 %v264, %v252
    %v277 = vadd.f32 %v265, %v253
    %278 = vxpose.xlu0.b32.start [1/16] %v266, 128
    %279 = vxpose.xlu0.b32.cont [2/16] 0.0, 128
    %280 = vxpose.xlu0.b32.cont [3/16] 0.0, 128
    %281 = vxpose.xlu0.b32.cont [4/16] 0.0, 128
    %282 = vxpose.xlu0.b32.cont [5/16] 0.0, 128
    %283 = vxpose.xlu0.b32.cont [6/16] 0.0, 128
    %284 = vxpose.xlu0.b32.cont [7/16] 0.0, 128
    %285 = vxpose.xlu0.b32.cont [8/16] 0.0, 128
    %286 = vxpose.xlu0.b32.cont [9/16] 0.0, 128
    %287 = vxpose.xlu0.b32.cont [10/16] 0.0, 128
    %288 = vxpose.xlu0.b32.cont [11/16] 0.0, 128
    %289 = vxpose.xlu0.b32.cont [12/16] 0.0, 128
    %290 = vxpose.xlu0.b32.cont [13/16] 0.0, 128
    %291 = vxpose.xlu0.b32.cont [14/16] 0.0, 128
    %292 = vxpose.xlu0.b32.cont [15/16] 0.0, 128
    %293 = vxpose.xlu0.b32.end [16/16] 0.0, 128
    %v294 = vpop.trf.xlu0
    %v295 = vpop.trf.xlu0
    %v296 = vpop.trf.xlu0
    %v297 = vpop.trf.xlu0
    %v298 = vpop.trf.xlu0
    %v299 = vpop.trf.xlu0
    %v300 = vpop.trf.xlu0
    %v301 = vpop.trf.xlu0
    %v302 = vpop.trf.xlu0
    %v303 = vpop.trf.xlu0
    %v304 = vpop.trf.xlu0
    %v305 = vpop.trf.xlu0
    %v306 = vpop.trf.xlu0
    %v307 = vpop.trf.xlu0
    %v308 = vpop.trf.xlu0
    %v309 = vpop.trf.xlu0
    %310 = vxpose.xlu0.b32.start [1/16] %v267, 128
    %311 = vxpose.xlu0.b32.cont [2/16] 0.0, 128
    %312 = vxpose.xlu0.b32.cont [3/16] 0.0, 128
    %313 = vxpose.xlu0.b32.cont [4/16] 0.0, 128
    %314 = vxpose.xlu0.b32.cont [5/16] 0.0, 128
    %315 = vxpose.xlu0.b32.cont [6/16] 0.0, 128
    %316 = vxpose.xlu0.b32.cont [7/16] 0.0, 128
    %317 = vxpose.xlu0.b32.cont [8/16] 0.0, 128
    %318 = vxpose.xlu0.b32.cont [9/16] 0.0, 128
    %319 = vxpose.xlu0.b32.cont [10/16] 0.0, 128
    %320 = vxpose.xlu0.b32.cont [11/16] 0.0, 128
    %321 = vxpose.xlu0.b32.cont [12/16] 0.0, 128
    %322 = vxpose.xlu0.b32.cont [13/16] 0.0, 128
    %323 = vxpose.xlu0.b32.cont [14/16] 0.0, 128
    %324 = vxpose.xlu0.b32.cont [15/16] 0.0, 128
    %325 = vxpose.xlu0.b32.end [16/16] 0.0, 128
    %v326 = vpop.trf.xlu0
    %v327 = vpop.trf.xlu0
    %v328 = vpop.trf.xlu0
    %v329 = vpop.trf.xlu0
    %v330 = vpop.trf.xlu0
    %v331 = vpop.trf.xlu0
    %v332 = vpop.trf.xlu0
    %v333 = vpop.trf.xlu0
    %v334 = vpop.trf.xlu0
    %v335 = vpop.trf.xlu0
    %v336 = vpop.trf.xlu0
    %v337 = vpop.trf.xlu0
    %v338 = vpop.trf.xlu0
    %v339 = vpop.trf.xlu0
    %v340 = vpop.trf.xlu0
    %v341 = vpop.trf.xlu0
    %342 = vxpose.xlu0.b32.start [1/16] %v268, 128
    %343 = vxpose.xlu0.b32.cont [2/16] 0.0, 128
    %344 = vxpose.xlu0.b32.cont [3/16] 0.0, 128
    %345 = vxpose.xlu0.b32.cont [4/16] 0.0, 128
    %346 = vxpose.xlu0.b32.cont [5/16] 0.0, 128
    %347 = vxpose.xlu0.b32.cont [6/16] 0.0, 128
    %348 = vxpose.xlu0.b32.cont [7/16] 0.0, 128
    %349 = vxpose.xlu0.b32.cont [8/16] 0.0, 128
    %350 = vxpose.xlu0.b32.cont [9/16] 0.0, 128
    %351 = vxpose.xlu0.b32.cont [10/16] 0.0, 128
    %352 = vxpose.xlu0.b32.cont [11/16] 0.0, 128
    %353 = vxpose.xlu0.b32.cont [12/16] 0.0, 128
    %354 = vxpose.xlu0.b32.cont [13/16] 0.0, 128
    %355 = vxpose.xlu0.b32.cont [14/16] 0.0, 128
    %356 = vxpose.xlu0.b32.cont [15/16] 0.0, 128
    %357 = vxpose.xlu0.b32.end [16/16] 0.0, 128
    %v358 = vpop.trf.xlu0
    %v359 = vpop.trf.xlu0
    %v360 = vpop.trf.xlu0
    %v361 = vpop.trf.xlu0
    %v362 = vpop.trf.xlu0
    %v363 = vpop.trf.xlu0
    %v364 = vpop.trf.xlu0
    %v365 = vpop.trf.xlu0
    %v366 = vpop.trf.xlu0
    %v367 = vpop.trf.xlu0
    %v368 = vpop.trf.xlu0
    %v369 = vpop.trf.xlu0
    %v370 = vpop.trf.xlu0
    %v371 = vpop.trf.xlu0
    %v372 = vpop.trf.xlu0
    %v373 = vpop.trf.xlu0
    %374 = vxpose.xlu0.b32.start [1/16] %v269, 128
    %375 = vxpose.xlu0.b32.cont [2/16] 0.0, 128
    %376 = vxpose.xlu0.b32.cont [3/16] 0.0, 128
    %377 = vxpose.xlu0.b32.cont [4/16] 0.0, 128
    %378 = vxpose.xlu0.b32.cont [5/16] 0.0, 128
    %379 = vxpose.xlu0.b32.cont [6/16] 0.0, 128
    %380 = vxpose.xlu0.b32.cont [7/16] 0.0, 128
    %381 = vxpose.xlu0.b32.cont [8/16] 0.0, 128
    %382 = vxpose.xlu0.b32.cont [9/16] 0.0, 128
    %383 = vxpose.xlu0.b32.cont [10/16] 0.0, 128
    %384 = vxpose.xlu0.b32.cont [11/16] 0.0, 128
    %385 = vxpose.xlu0.b32.cont [12/16] 0.0, 128
    %386 = vxpose.xlu0.b32.cont [13/16] 0.0, 128
    %387 = vxpose.xlu0.b32.cont [14/16] 0.0, 128
    %388 = vxpose.xlu0.b32.cont [15/16] 0.0, 128
    %389 = vxpose.xlu0.b32.end [16/16] 0.0, 128
    %v390 = vpop.trf.xlu0
    %v391 = vpop.trf.xlu0
    %v392 = vpop.trf.xlu0
    %v393 = vpop.trf.xlu0
    %v394 = vpop.trf.xlu0
    %v395 = vpop.trf.xlu0
    %v396 = vpop.trf.xlu0
    %v397 = vpop.trf.xlu0
    %v398 = vpop.trf.xlu0
    %v399 = vpop.trf.xlu0
    %v400 = vpop.trf.xlu0
    %v401 = vpop.trf.xlu0
    %v402 = vpop.trf.xlu0
    %v403 = vpop.trf.xlu0
    %v404 = vpop.trf.xlu0
    %v405 = vpop.trf.xlu0
    %406 = vxpose.xlu0.b32.start [1/16] %v270, 128
    %407 = vxpose.xlu0.b32.cont [2/16] 0.0, 128
    %408 = vxpose.xlu0.b32.cont [3/16] 0.0, 128
    %409 = vxpose.xlu0.b32.cont [4/16] 0.0, 128
    %410 = vxpose.xlu0.b32.cont [5/16] 0.0, 128
    %411 = vxpose.xlu0.b32.cont [6/16] 0.0, 128
    %412 = vxpose.xlu0.b32.cont [7/16] 0.0, 128
    %413 = vxpose.xlu0.b32.cont [8/16] 0.0, 128
    %414 = vxpose.xlu0.b32.cont [9/16] 0.0, 128
    %415 = vxpose.xlu0.b32.cont [10/16] 0.0, 128
    %416 = vxpose.xlu0.b32.cont [11/16] 0.0, 128
    %417 = vxpose.xlu0.b32.cont [12/16] 0.0, 128
    %418 = vxpose.xlu0.b32.cont [13/16] 0.0, 128
    %419 = vxpose.xlu0.b32.cont [14/16] 0.0, 128
    %420 = vxpose.xlu0.b32.cont [15/16] 0.0, 128
    %421 = vxpose.xlu0.b32.end [16/16] 0.0, 128
    %v422 = vpop.trf.xlu0
    %v423 = vpop.trf.xlu0
    %v424 = vpop.trf.xlu0
    %v425 = vpop.trf.xlu0
    %v426 = vpop.trf.xlu0
    %v427 = vpop.trf.xlu0
    %v428 = vpop.trf.xlu0
    %v429 = vpop.trf.xlu0
    %v430 = vpop.trf.xlu0
    %v431 = vpop.trf.xlu0
    %v432 = vpop.trf.xlu0
    %v433 = vpop.trf.xlu0
    %v434 = vpop.trf.xlu0
    %v435 = vpop.trf.xlu0
    %v436 = vpop.trf.xlu0
    %v437 = vpop.trf.xlu0
    %438 = vxpose.xlu0.b32.start [1/16] %v271, 128
    %439 = vxpose.xlu0.b32.cont [2/16] 0.0, 128
    %440 = vxpose.xlu0.b32.cont [3/16] 0.0, 128
    %441 = vxpose.xlu0.b32.cont [4/16] 0.0, 128
    %442 = vxpose.xlu0.b32.cont [5/16] 0.0, 128
    %443 = vxpose.xlu0.b32.cont [6/16] 0.0, 128
    %444 = vxpose.xlu0.b32.cont [7/16] 0.0, 128
    %445 = vxpose.xlu0.b32.cont [8/16] 0.0, 128
    %446 = vxpose.xlu0.b32.cont [9/16] 0.0, 128
    %447 = vxpose.xlu0.b32.cont [10/16] 0.0, 128
    %448 = vxpose.xlu0.b32.cont [11/16] 0.0, 128
    %449 = vxpose.xlu0.b32.cont [12/16] 0.0, 128
    %450 = vxpose.xlu0.b32.cont [13/16] 0.0, 128
    %451 = vxpose.xlu0.b32.cont [14/16] 0.0, 128
    %452 = vxpose.xlu0.b32.cont [15/16] 0.0, 128
    %453 = vxpose.xlu0.b32.end [16/16] 0.0, 128
    %v454 = vpop.trf.xlu0
    %v455 = vpop.trf.xlu0
    %v456 = vpop.trf.xlu0
    %v457 = vpop.trf.xlu0
    %v458 = vpop.trf.xlu0
    %v459 = vpop.trf.xlu0
    %v460 = vpop.trf.xlu0
    %v461 = vpop.trf.xlu0
    %v462 = vpop.trf.xlu0
    %v463 = vpop.trf.xlu0
    %v464 = vpop.trf.xlu0
    %v465 = vpop.trf.xlu0
    %v466 = vpop.trf.xlu0
    %v467 = vpop.trf.xlu0
    %v468 = vpop.trf.xlu0
    %v469 = vpop.trf.xlu0
    %470 = vxpose.xlu0.b32.start [1/16] %v272, 128
    %471 = vxpose.xlu0.b32.cont [2/16] 0.0, 128
    %472 = vxpose.xlu0.b32.cont [3/16] 0.0, 128
    %473 = vxpose.xlu0.b32.cont [4/16] 0.0, 128
    %474 = vxpose.xlu0.b32.cont [5/16] 0.0, 128
    %475 = vxpose.xlu0.b32.cont [6/16] 0.0, 128
    %476 = vxpose.xlu0.b32.cont [7/16] 0.0, 128
    %477 = vxpose.xlu0.b32.cont [8/16] 0.0, 128
    %478 = vxpose.xlu0.b32.cont [9/16] 0.0, 128
    %479 = vxpose.xlu0.b32.cont [10/16] 0.0, 128
    %480 = vxpose.xlu0.b32.cont [11/16] 0.0, 128
    %481 = vxpose.xlu0.b32.cont [12/16] 0.0, 128
    %482 = vxpose.xlu0.b32.cont [13/16] 0.0, 128
    %483 = vxpose.xlu0.b32.cont [14/16] 0.0, 128
    %484 = vxpose.xlu0.b32.cont [15/16] 0.0, 128
    %485 = vxpose.xlu0.b32.end [16/16] 0.0, 128
    %v486 = vpop.trf.xlu0
    %v487 = vpop.trf.xlu0
    %v488 = vpop.trf.xlu0
    %v489 = vpop.trf.xlu0
    %v490 = vpop.trf.xlu0
    %v491 = vpop.trf.xlu0
    %v492 = vpop.trf.xlu0
    %v493 = vpop.trf.xlu0
    %v494 = vpop.trf.xlu0
    %v495 = vpop.trf.xlu0
    %v496 = vpop.trf.xlu0
    %v497 = vpop.trf.xlu0
    %v498 = vpop.trf.xlu0
    %v499 = vpop.trf.xlu0
    %v500 = vpop.trf.xlu0
    %v501 = vpop.trf.xlu0
    %502 = vxpose.xlu0.b32.start [1/16] %v273, 128
    %503 = vxpose.xlu0.b32.cont [2/16] 0.0, 128
    %504 = vxpose.xlu0.b32.cont [3/16] 0.0, 128
    %505 = vxpose.xlu0.b32.cont [4/16] 0.0, 128
    %506 = vxpose.xlu0.b32.cont [5/16] 0.0, 128
    %507 = vxpose.xlu0.b32.cont [6/16] 0.0, 128
    %508 = vxpose.xlu0.b32.cont [7/16] 0.0, 128
    %509 = vxpose.xlu0.b32.cont [8/16] 0.0, 128
    %510 = vxpose.xlu0.b32.cont [9/16] 0.0, 128
    %511 = vxpose.xlu0.b32.cont [10/16] 0.0, 128
    %512 = vxpose.xlu0.b32.cont [11/16] 0.0, 128
    %513 = vxpose.xlu0.b32.cont [12/16] 0.0, 128
    %514 = vxpose.xlu0.b32.cont [13/16] 0.0, 128
    %515 = vxpose.xlu0.b32.cont [14/16] 0.0, 128
    %516 = vxpose.xlu0.b32.cont [15/16] 0.0, 128
    %517 = vxpose.xlu0.b32.end [16/16] 0.0, 128
    %v518 = vpop.trf.xlu0
    %v519 = vpop.trf.xlu0
    %v520 = vpop.trf.xlu0
    %v521 = vpop.trf.xlu0
    %v522 = vpop.trf.xlu0
    %v523 = vpop.trf.xlu0
    %v524 = vpop.trf.xlu0
    %v525 = vpop.trf.xlu0
    %v526 = vpop.trf.xlu0
    %v527 = vpop.trf.xlu0
    %v528 = vpop.trf.xlu0
    %v529 = vpop.trf.xlu0
    %v530 = vpop.trf.xlu0
    %v531 = vpop.trf.xlu0
    %v532 = vpop.trf.xlu0
    %v533 = vpop.trf.xlu0
    %534 = vxpose.xlu0.b32.start [1/16] %v274, 128
    %535 = vxpose.xlu0.b32.cont [2/16] 0.0, 128
    %536 = vxpose.xlu0.b32.cont [3/16] 0.0, 128
    %537 = vxpose.xlu0.b32.cont [4/16] 0.0, 128
    %538 = vxpose.xlu0.b32.cont [5/16] 0.0, 128
    %539 = vxpose.xlu0.b32.cont [6/16] 0.0, 128
    %540 = vxpose.xlu0.b32.cont [7/16] 0.0, 128
    %541 = vxpose.xlu0.b32.cont [8/16] 0.0, 128
    %542 = vxpose.xlu0.b32.cont [9/16] 0.0, 128
    %543 = vxpose.xlu0.b32.cont [10/16] 0.0, 128
    %544 = vxpose.xlu0.b32.cont [11/16] 0.0, 128
    %545 = vxpose.xlu0.b32.cont [12/16] 0.0, 128
    %546 = vxpose.xlu0.b32.cont [13/16] 0.0, 128
    %547 = vxpose.xlu0.b32.cont [14/16] 0.0, 128
    %548 = vxpose.xlu0.b32.cont [15/16] 0.0, 128
    %549 = vxpose.xlu0.b32.end [16/16] 0.0, 128
    %v550 = vpop.trf.xlu0
    %v551 = vpop.trf.xlu0
    %v552 = vpop.trf.xlu0
    %v553 = vpop.trf.xlu0
    %v554 = vpop.trf.xlu0
    %v555 = vpop.trf.xlu0
    %v556 = vpop.trf.xlu0
    %v557 = vpop.trf.xlu0
    %v558 = vpop.trf.xlu0
    %v559 = vpop.trf.xlu0
    %v560 = vpop.trf.xlu0
    %v561 = vpop.trf.xlu0
    %v562 = vpop.trf.xlu0
    %v563 = vpop.trf.xlu0
    %v564 = vpop.trf.xlu0
    %v565 = vpop.trf.xlu0
    %566 = vxpose.xlu0.b32.start [1/16] %v275, 128
    %567 = vxpose.xlu0.b32.cont [2/16] 0.0, 128
    %568 = vxpose.xlu0.b32.cont [3/16] 0.0, 128
    %569 = vxpose.xlu0.b32.cont [4/16] 0.0, 128
    %570 = vxpose.xlu0.b32.cont [5/16] 0.0, 128
    %571 = vxpose.xlu0.b32.cont [6/16] 0.0, 128
    %572 = vxpose.xlu0.b32.cont [7/16] 0.0, 128
    %573 = vxpose.xlu0.b32.cont [8/16] 0.0, 128
    %574 = vxpose.xlu0.b32.cont [9/16] 0.0, 128
    %575 = vxpose.xlu0.b32.cont [10/16] 0.0, 128
    %576 = vxpose.xlu0.b32.cont [11/16] 0.0, 128
    %577 = vxpose.xlu0.b32.cont [12/16] 0.0, 128
    %578 = vxpose.xlu0.b32.cont [13/16] 0.0, 128
    %579 = vxpose.xlu0.b32.cont [14/16] 0.0, 128
    %580 = vxpose.xlu0.b32.cont [15/16] 0.0, 128
    %581 = vxpose.xlu0.b32.end [16/16] 0.0, 128
    %v582 = vpop.trf.xlu0
    %v583 = vpop.trf.xlu0
    %v584 = vpop.trf.xlu0
    %v585 = vpop.trf.xlu0
    %v586 = vpop.trf.xlu0
    %v587 = vpop.trf.xlu0
    %v588 = vpop.trf.xlu0
    %v589 = vpop.trf.xlu0
    %v590 = vpop.trf.xlu0
    %v591 = vpop.trf.xlu0
    %v592 = vpop.trf.xlu0
    %v593 = vpop.trf.xlu0
    %v594 = vpop.trf.xlu0
    %v595 = vpop.trf.xlu0
    %v596 = vpop.trf.xlu0
    %v597 = vpop.trf.xlu0
    %598 = vxpose.xlu0.b32.start [1/16] %v276, 128
    %599 = vxpose.xlu0.b32.cont [2/16] 0.0, 128
    %600 = vxpose.xlu0.b32.cont [3/16] 0.0, 128
    %601 = vxpose.xlu0.b32.cont [4/16] 0.0, 128
    %602 = vxpose.xlu0.b32.cont [5/16] 0.0, 128
    %603 = vxpose.xlu0.b32.cont [6/16] 0.0, 128
    %604 = vxpose.xlu0.b32.cont [7/16] 0.0, 128
    %605 = vxpose.xlu0.b32.cont [8/16] 0.0, 128
    %606 = vxpose.xlu0.b32.cont [9/16] 0.0, 128
    %607 = vxpose.xlu0.b32.cont [10/16] 0.0, 128
    %608 = vxpose.xlu0.b32.cont [11/16] 0.0, 128
    %609 = vxpose.xlu0.b32.cont [12/16] 0.0, 128
    %610 = vxpose.xlu0.b32.cont [13/16] 0.0, 128
    %611 = vxpose.xlu0.b32.cont [14/16] 0.0, 128
    %612 = vxpose.xlu0.b32.cont [15/16] 0.0, 128
    %613 = vxpose.xlu0.b32.end [16/16] 0.0, 128
    %v614 = vpop.trf.xlu0
    %v615 = vpop.trf.xlu0
    %v616 = vpop.trf.xlu0
    %v617 = vpop.trf.xlu0
    %v618 = vpop.trf.xlu0
    %v619 = vpop.trf.xlu0
    %v620 = vpop.trf.xlu0
    %v621 = vpop.trf.xlu0
    %v622 = vpop.trf.xlu0
    %v623 = vpop.trf.xlu0
    %v624 = vpop.trf.xlu0
    %v625 = vpop.trf.xlu0
    %v626 = vpop.trf.xlu0
    %v627 = vpop.trf.xlu0
    %v628 = vpop.trf.xlu0
    %v629 = vpop.trf.xlu0
    %630 = vxpose.xlu0.b32.start [1/16] %v277, 128
    %631 = vxpose.xlu0.b32.cont [2/16] 0.0, 128
    %632 = vxpose.xlu0.b32.cont [3/16] 0.0, 128
    %633 = vxpose.xlu0.b32.cont [4/16] 0.0, 128
    %634 = vxpose.xlu0.b32.cont [5/16] 0.0, 128
    %635 = vxpose.xlu0.b32.cont [6/16] 0.0, 128
    %636 = vxpose.xlu0.b32.cont [7/16] 0.0, 128
    %637 = vxpose.xlu0.b32.cont [8/16] 0.0, 128
    %638 = vxpose.xlu0.b32.cont [9/16] 0.0, 128
    %639 = vxpose.xlu0.b32.cont [10/16] 0.0, 128
    %640 = vxpose.xlu0.b32.cont [11/16] 0.0, 128
    %641 = vxpose.xlu0.b32.cont [12/16] 0.0, 128
    %642 = vxpose.xlu0.b32.cont [13/16] 0.0, 128
    %643 = vxpose.xlu0.b32.cont [14/16] 0.0, 128
    %644 = vxpose.xlu0.b32.cont [15/16] 0.0, 128
    %645 = vxpose.xlu0.b32.end [16/16] 0.0, 128
    %v646 = vpop.trf.xlu0
    %v647 = vpop.trf.xlu0
    %v648 = vpop.trf.xlu0
    %v649 = vpop.trf.xlu0
    %v650 = vpop.trf.xlu0
    %v651 = vpop.trf.xlu0
    %v652 = vpop.trf.xlu0
    %v653 = vpop.trf.xlu0
    %v654 = vpop.trf.xlu0
    %v655 = vpop.trf.xlu0
    %v656 = vpop.trf.xlu0
    %v657 = vpop.trf.xlu0
    %v658 = vpop.trf.xlu0
    %v659 = vpop.trf.xlu0
    %v660 = vpop.trf.xlu0
    %v661 = vpop.trf.xlu0
    %vm662 = vcmask 64512
    %663 = vst.msk [vmem:[%s1] sm:$0xff] %vm662, %v294
    %664 = vst.msk [vmem:[%s1 + $0x8] sm:$0xff] %vm662, %v295
    %665 = vst.msk [vmem:[%s1 + $0x10] sm:$0xff] %vm662, %v296
    %666 = vst.msk [vmem:[%s1 + $0x18] sm:$0xff] %vm662, %v297
    %667 = vst.msk [vmem:[%s1 + $0x20] sm:$0xff] %vm662, %v298
    %668 = vst.msk [vmem:[%s1 + $0x28] sm:$0xff] %vm662, %v299
    %669 = vst.msk [vmem:[%s1 + $0x30] sm:$0xff] %vm662, %v300
    %670 = vst.msk [vmem:[%s1 + $0x38] sm:$0xff] %vm662, %v301
    %671 = vst.msk [vmem:[%s1 + $0x40] sm:$0xff] %vm662, %v302
    %672 = vst.msk [vmem:[%s1 + $0x48] sm:$0xff] %vm662, %v303
    %673 = vst.msk [vmem:[%s1 + $0x50] sm:$0xff] %vm662, %v304
    %674 = vst.msk [vmem:[%s1 + $0x58] sm:$0xff] %vm662, %v305
    %675 = vst.msk [vmem:[%s1 + $0x60] sm:$0xff] %vm662, %v306
    %676 = vst.msk [vmem:[%s1 + $0x68] sm:$0xff] %vm662, %v307
    %677 = vst.msk [vmem:[%s1 + $0x70] sm:$0xff] %vm662, %v308
    %678 = vst.msk [vmem:[%s1 + $0x78] sm:$0xff] %vm662, %v309
    %679 = vst.msk [vmem:[%s1 + $0x80] sm:$0xff] %vm662, %v326
    %680 = vst.msk [vmem:[%s1 + $0x88] sm:$0xff] %vm662, %v327
    %681 = vst.msk [vmem:[%s1 + $0x90] sm:$0xff] %vm662, %v328
    %682 = vst.msk [vmem:[%s1 + $0x98] sm:$0xff] %vm662, %v329
    %683 = vst.msk [vmem:[%s1 + $0xa0] sm:$0xff] %vm662, %v330
    %684 = vst.msk [vmem:[%s1 + $0xa8] sm:$0xff] %vm662, %v331
    %685 = vst.msk [vmem:[%s1 + $0xb0] sm:$0xff] %vm662, %v332
    %686 = vst.msk [vmem:[%s1 + $0xb8] sm:$0xff] %vm662, %v333
    %687 = vst.msk [vmem:[%s1 + $0xc0] sm:$0xff] %vm662, %v334
    %688 = vst.msk [vmem:[%s1 + $0xc8] sm:$0xff] %vm662, %v335
    %689 = vst.msk [vmem:[%s1 + $0xd0] sm:$0xff] %vm662, %v336
    %690 = vst.msk [vmem:[%s1 + $0xd8] sm:$0xff] %vm662, %v337
    %691 = vst.msk [vmem:[%s1 + $0xe0] sm:$0xff] %vm662, %v338
    %692 = vst.msk [vmem:[%s1 + $0xe8] sm:$0xff] %vm662, %v339
    %693 = vst.msk [vmem:[%s1 + $0xf0] sm:$0xff] %vm662, %v340
    %694 = vst.msk [vmem:[%s1 + $0xf8] sm:$0xff] %vm662, %v341
    %695 = vst.msk [vmem:[%s1 + $0x100] sm:$0xff] %vm662, %v358
    %696 = vst.msk [vmem:[%s1 + $0x108] sm:$0xff] %vm662, %v359
    %697 = vst.msk [vmem:[%s1 + $0x110] sm:$0xff] %vm662, %v360
    %698 = vst.msk [vmem:[%s1 + $0x118] sm:$0xff] %vm662, %v361
    %699 = vst.msk [vmem:[%s1 + $0x120] sm:$0xff] %vm662, %v362
    %700 = vst.msk [vmem:[%s1 + $0x128] sm:$0xff] %vm662, %v363
    %701 = vst.msk [vmem:[%s1 + $0x130] sm:$0xff] %vm662, %v364
    %702 = vst.msk [vmem:[%s1 + $0x138] sm:$0xff] %vm662, %v365
    %703 = vst.msk [vmem:[%s1 + $0x140] sm:$0xff] %vm662, %v366
    %704 = vst.msk [vmem:[%s1 + $0x148] sm:$0xff] %vm662, %v367
    %705 = vst.msk [vmem:[%s1 + $0x150] sm:$0xff] %vm662, %v368
    %706 = vst.msk [vmem:[%s1 + $0x158] sm:$0xff] %vm662, %v369
    %707 = vst.msk [vmem:[%s1 + $0x160] sm:$0xff] %vm662, %v370
    %708 = vst.msk [vmem:[%s1 + $0x168] sm:$0xff] %vm662, %v371
    %709 = vst.msk [vmem:[%s1 + $0x170] sm:$0xff] %vm662, %v372
    %710 = vst.msk [vmem:[%s1 + $0x178] sm:$0xff] %vm662, %v373
    %711 = vst.msk [vmem:[%s1 + $0x180] sm:$0xff] %vm662, %v390
    %712 = vst.msk [vmem:[%s1 + $0x188] sm:$0xff] %vm662, %v391
    %713 = vst.msk [vmem:[%s1 + $0x190] sm:$0xff] %vm662, %v392
    %714 = vst.msk [vmem:[%s1 + $0x198] sm:$0xff] %vm662, %v393
    %715 = vst.msk [vmem:[%s1 + $0x1a0] sm:$0xff] %vm662, %v394
    %716 = vst.msk [vmem:[%s1 + $0x1a8] sm:$0xff] %vm662, %v395
    %717 = vst.msk [vmem:[%s1 + $0x1b0] sm:$0xff] %vm662, %v396
    %718 = vst.msk [vmem:[%s1 + $0x1b8] sm:$0xff] %vm662, %v397
    %719 = vst.msk [vmem:[%s1 + $0x1c0] sm:$0xff] %vm662, %v398
    %720 = vst.msk [vmem:[%s1 + $0x1c8] sm:$0xff] %vm662, %v399
    %721 = vst.msk [vmem:[%s1 + $0x1d0] sm:$0xff] %vm662, %v400
    %722 = vst.msk [vmem:[%s1 + $0x1d8] sm:$0xff] %vm662, %v401
    %723 = vst.msk [vmem:[%s1 + $0x1e0] sm:$0xff] %vm662, %v402
    %724 = vst.msk [vmem:[%s1 + $0x1e8] sm:$0xff] %vm662, %v403
    %725 = vst.msk [vmem:[%s1 + $0x1f0] sm:$0xff] %vm662, %v404
    %726 = vst.msk [vmem:[%s1 + $0x1f8] sm:$0xff] %vm662, %v405
    %727 = vst.msk [vmem:[%s1 + $0x200] sm:$0xff] %vm662, %v422
    %728 = vst.msk [vmem:[%s1 + $0x208] sm:$0xff] %vm662, %v423
    %729 = vst.msk [vmem:[%s1 + $0x210] sm:$0xff] %vm662, %v424
    %730 = vst.msk [vmem:[%s1 + $0x218] sm:$0xff] %vm662, %v425
    %731 = vst.msk [vmem:[%s1 + $0x220] sm:$0xff] %vm662, %v426
    %732 = vst.msk [vmem:[%s1 + $0x228] sm:$0xff] %vm662, %v427
    %733 = vst.msk [vmem:[%s1 + $0x230] sm:$0xff] %vm662, %v428
    %734 = vst.msk [vmem:[%s1 + $0x238] sm:$0xff] %vm662, %v429
    %735 = vst.msk [vmem:[%s1 + $0x240] sm:$0xff] %vm662, %v430
    %736 = vst.msk [vmem:[%s1 + $0x248] sm:$0xff] %vm662, %v431
    %737 = vst.msk [vmem:[%s1 + $0x250] sm:$0xff] %vm662, %v432
    %738 = vst.msk [vmem:[%s1 + $0x258] sm:$0xff] %vm662, %v433
    %739 = vst.msk [vmem:[%s1 + $0x260] sm:$0xff] %vm662, %v434
    %740 = vst.msk [vmem:[%s1 + $0x268] sm:$0xff] %vm662, %v435
    %741 = vst.msk [vmem:[%s1 + $0x270] sm:$0xff] %vm662, %v436
    %742 = vst.msk [vmem:[%s1 + $0x278] sm:$0xff] %vm662, %v437
    %743 = vst.msk [vmem:[%s1 + $0x280] sm:$0xff] %vm662, %v454
    %744 = vst.msk [vmem:[%s1 + $0x288] sm:$0xff] %vm662, %v455
    %745 = vst.msk [vmem:[%s1 + $0x290] sm:$0xff] %vm662, %v456
    %746 = vst.msk [vmem:[%s1 + $0x298] sm:$0xff] %vm662, %v457
    %747 = vst.msk [vmem:[%s1 + $0x2a0] sm:$0xff] %vm662, %v458
    %748 = vst.msk [vmem:[%s1 + $0x2a8] sm:$0xff] %vm662, %v459
    %749 = vst.msk [vmem:[%s1 + $0x2b0] sm:$0xff] %vm662, %v460
    %750 = vst.msk [vmem:[%s1 + $0x2b8] sm:$0xff] %vm662, %v461
    %751 = vst.msk [vmem:[%s1 + $0x2c0] sm:$0xff] %vm662, %v462
    %752 = vst.msk [vmem:[%s1 + $0x2c8] sm:$0xff] %vm662, %v463
    %753 = vst.msk [vmem:[%s1 + $0x2d0] sm:$0xff] %vm662, %v464
    %754 = vst.msk [vmem:[%s1 + $0x2d8] sm:$0xff] %vm662, %v465
    %755 = vst.msk [vmem:[%s1 + $0x2e0] sm:$0xff] %vm662, %v466
    %756 = vst.msk [vmem:[%s1 + $0x2e8] sm:$0xff] %vm662, %v467
    %757 = vst.msk [vmem:[%s1 + $0x2f0] sm:$0xff] %vm662, %v468
    %758 = vst.msk [vmem:[%s1 + $0x2f8] sm:$0xff] %vm662, %v469
    %759 = vst.msk [vmem:[%s1 + $0x300] sm:$0xff] %vm662, %v486
    %760 = vst.msk [vmem:[%s1 + $0x308] sm:$0xff] %vm662, %v487
    %761 = vst.msk [vmem:[%s1 + $0x310] sm:$0xff] %vm662, %v488
    %762 = vst.msk [vmem:[%s1 + $0x318] sm:$0xff] %vm662, %v489
    %763 = vst.msk [vmem:[%s1 + $0x320] sm:$0xff] %vm662, %v490
    %764 = vst.msk [vmem:[%s1 + $0x328] sm:$0xff] %vm662, %v491
    %765 = vst.msk [vmem:[%s1 + $0x330] sm:$0xff] %vm662, %v492
    %766 = vst.msk [vmem:[%s1 + $0x338] sm:$0xff] %vm662, %v493
    %767 = vst.msk [vmem:[%s1 + $0x340] sm:$0xff] %vm662, %v494
    %768 = vst.msk [vmem:[%s1 + $0x348] sm:$0xff] %vm662, %v495
    %769 = vst.msk [vmem:[%s1 + $0x350] sm:$0xff] %vm662, %v496
    %770 = vst.msk [vmem:[%s1 + $0x358] sm:$0xff] %vm662, %v497
    %771 = vst.msk [vmem:[%s1 + $0x360] sm:$0xff] %vm662, %v498
    %772 = vst.msk [vmem:[%s1 + $0x368] sm:$0xff] %vm662, %v499
    %773 = vst.msk [vmem:[%s1 + $0x370] sm:$0xff] %vm662, %v500
    %774 = vst.msk [vmem:[%s1 + $0x378] sm:$0xff] %vm662, %v501
    %775 = vst.msk [vmem:[%s1 + $0x380] sm:$0xff] %vm662, %v518
    %776 = vst.msk [vmem:[%s1 + $0x388] sm:$0xff] %vm662, %v519
    %777 = vst.msk [vmem:[%s1 + $0x390] sm:$0xff] %vm662, %v520
    %778 = vst.msk [vmem:[%s1 + $0x398] sm:$0xff] %vm662, %v521
    %779 = vst.msk [vmem:[%s1 + $0x3a0] sm:$0xff] %vm662, %v522
    %780 = vst.msk [vmem:[%s1 + $0x3a8] sm:$0xff] %vm662, %v523
    %781 = vst.msk [vmem:[%s1 + $0x3b0] sm:$0xff] %vm662, %v524
    %782 = vst.msk [vmem:[%s1 + $0x3b8] sm:$0xff] %vm662, %v525
    %783 = vst.msk [vmem:[%s1 + $0x3c0] sm:$0xff] %vm662, %v526
    %784 = vst.msk [vmem:[%s1 + $0x3c8] sm:$0xff] %vm662, %v527
    %785 = vst.msk [vmem:[%s1 + $0x3d0] sm:$0xff] %vm662, %v528
    %786 = vst.msk [vmem:[%s1 + $0x3d8] sm:$0xff] %vm662, %v529
    %787 = vst.msk [vmem:[%s1 + $0x3e0] sm:$0xff] %vm662, %v530
    %788 = vst.msk [vmem:[%s1 + $0x3e8] sm:$0xff] %vm662, %v531
    %789 = vst.msk [vmem:[%s1 + $0x3f0] sm:$0xff] %vm662, %v532
    %790 = vst.msk [vmem:[%s1 + $0x3f8] sm:$0xff] %vm662, %v533
    %791 = vst.msk [vmem:[%s1 + $0x400] sm:$0xff] %vm662, %v550
    %792 = vst.msk [vmem:[%s1 + $0x408] sm:$0xff] %vm662, %v551
    %793 = vst.msk [vmem:[%s1 + $0x410] sm:$0xff] %vm662, %v552
    %794 = vst.msk [vmem:[%s1 + $0x418] sm:$0xff] %vm662, %v553
    %795 = vst.msk [vmem:[%s1 + $0x420] sm:$0xff] %vm662, %v554
    %796 = vst.msk [vmem:[%s1 + $0x428] sm:$0xff] %vm662, %v555
    %797 = vst.msk [vmem:[%s1 + $0x430] sm:$0xff] %vm662, %v556
    %798 = vst.msk [vmem:[%s1 + $0x438] sm:$0xff] %vm662, %v557
    %799 = vst.msk [vmem:[%s1 + $0x440] sm:$0xff] %vm662, %v558
    %800 = vst.msk [vmem:[%s1 + $0x448] sm:$0xff] %vm662, %v559
    %801 = vst.msk [vmem:[%s1 + $0x450] sm:$0xff] %vm662, %v560
    %802 = vst.msk [vmem:[%s1 + $0x458] sm:$0xff] %vm662, %v561
    %803 = vst.msk [vmem:[%s1 + $0x460] sm:$0xff] %vm662, %v562
    %804 = vst.msk [vmem:[%s1 + $0x468] sm:$0xff] %vm662, %v563
    %805 = vst.msk [vmem:[%s1 + $0x470] sm:$0xff] %vm662, %v564
    %806 = vst.msk [vmem:[%s1 + $0x478] sm:$0xff] %vm662, %v565
    %807 = vst.msk [vmem:[%s1 + $0x480] sm:$0xff] %vm662, %v582
    %808 = vst.msk [vmem:[%s1 + $0x488] sm:$0xff] %vm662, %v583
    %809 = vst.msk [vmem:[%s1 + $0x490] sm:$0xff] %vm662, %v584
    %810 = vst.msk [vmem:[%s1 + $0x498] sm:$0xff] %vm662, %v585
    %811 = vst.msk [vmem:[%s1 + $0x4a0] sm:$0xff] %vm662, %v586
    %812 = vst.msk [vmem:[%s1 + $0x4a8] sm:$0xff] %vm662, %v587
    %813 = vst.msk [vmem:[%s1 + $0x4b0] sm:$0xff] %vm662, %v588
    %814 = vst.msk [vmem:[%s1 + $0x4b8] sm:$0xff] %vm662, %v589
    %815 = vst.msk [vmem:[%s1 + $0x4c0] sm:$0xff] %vm662, %v590
    %816 = vst.msk [vmem:[%s1 + $0x4c8] sm:$0xff] %vm662, %v591
    %817 = vst.msk [vmem:[%s1 + $0x4d0] sm:$0xff] %vm662, %v592
    %818 = vst.msk [vmem:[%s1 + $0x4d8] sm:$0xff] %vm662, %v593
    %819 = vst.msk [vmem:[%s1 + $0x4e0] sm:$0xff] %vm662, %v594
    %820 = vst.msk [vmem:[%s1 + $0x4e8] sm:$0xff] %vm662, %v595
    %821 = vst.msk [vmem:[%s1 + $0x4f0] sm:$0xff] %vm662, %v596
    %822 = vst.msk [vmem:[%s1 + $0x4f8] sm:$0xff] %vm662, %v597
    %823 = vst.msk [vmem:[%s1 + $0x500] sm:$0xff] %vm662, %v614
    %824 = vst.msk [vmem:[%s1 + $0x508] sm:$0xff] %vm662, %v615
    %825 = vst.msk [vmem:[%s1 + $0x510] sm:$0xff] %vm662, %v616
    %826 = vst.msk [vmem:[%s1 + $0x518] sm:$0xff] %vm662, %v617
    %827 = vst.msk [vmem:[%s1 + $0x520] sm:$0xff] %vm662, %v618
    %828 = vst.msk [vmem:[%s1 + $0x528] sm:$0xff] %vm662, %v619
    %829 = vst.msk [vmem:[%s1 + $0x530] sm:$0xff] %vm662, %v620
    %830 = vst.msk [vmem:[%s1 + $0x538] sm:$0xff] %vm662, %v621
    %831 = vst.msk [vmem:[%s1 + $0x540] sm:$0xff] %vm662, %v622
    %832 = vst.msk [vmem:[%s1 + $0x548] sm:$0xff] %vm662, %v623
    %833 = vst.msk [vmem:[%s1 + $0x550] sm:$0xff] %vm662, %v624
    %834 = vst.msk [vmem:[%s1 + $0x558] sm:$0xff] %vm662, %v625
    %835 = vst.msk [vmem:[%s1 + $0x560] sm:$0xff] %vm662, %v626
    %836 = vst.msk [vmem:[%s1 + $0x568] sm:$0xff] %vm662, %v627
    %837 = vst.msk [vmem:[%s1 + $0x570] sm:$0xff] %vm662, %v628
    %838 = vst.msk [vmem:[%s1 + $0x578] sm:$0xff] %vm662, %v629
    %839 = vst.msk [vmem:[%s1 + $0x580] sm:$0xff] %vm662, %v646
    %840 = vst.msk [vmem:[%s1 + $0x588] sm:$0xff] %vm662, %v647
    %841 = vst.msk [vmem:[%s1 + $0x590] sm:$0xff] %vm662, %v648
    %842 = vst.msk [vmem:[%s1 + $0x598] sm:$0xff] %vm662, %v649
    %843 = vst.msk [vmem:[%s1 + $0x5a0] sm:$0xff] %vm662, %v650
    %844 = vst.msk [vmem:[%s1 + $0x5a8] sm:$0xff] %vm662, %v651
    %845 = vst.msk [vmem:[%s1 + $0x5b0] sm:$0xff] %vm662, %v652
    %846 = vst.msk [vmem:[%s1 + $0x5b8] sm:$0xff] %vm662, %v653
    %847 = vst.msk [vmem:[%s1 + $0x5c0] sm:$0xff] %vm662, %v654
    %848 = vst.msk [vmem:[%s1 + $0x5c8] sm:$0xff] %vm662, %v655
    %849 = vst.msk [vmem:[%s1 + $0x5d0] sm:$0xff] %vm662, %v656
    %850 = vst.msk [vmem:[%s1 + $0x5d8] sm:$0xff] %vm662, %v657
    %851 = vst.msk [vmem:[%s1 + $0x5e0] sm:$0xff] %vm662, %v658
    %852 = vst.msk [vmem:[%s1 + $0x5e8] sm:$0xff] %vm662, %v659
    %853 = vst.msk [vmem:[%s1 + $0x5f0] sm:$0xff] %vm662, %v660
    %854 = vst.msk [vmem:[%s1 + $0x5f8] sm:$0xff] %vm662, %v661
    // Predicated region
    $region10: #{tpu_custom_call.1} parent=1 // pred_check
      _
    $region11: #{tpu_custom_call.1} parent=1 // pred_check_branch
      %856 = sbr.rel (0) target = $region13
    $region12: #{tpu_custom_call.1} parent=1 // pred_region
      _
    $region13: #{tpu_custom_call.1} parent=1 // pred_fallthru
      _
    // Predicated region
    $region14: #{tpu_custom_call.1} parent=1 // pred_check
      _
    $region15: #{tpu_custom_call.1} parent=1 // pred_check_branch
      %858 = sbr.rel (0) target = $region17
    $region16: #{tpu_custom_call.1} parent=1 // pred_region
      _
    $region17: #{tpu_custom_call.1} parent=1 // pred_fallthru
      _
    %859 = vsyncpa [#allocation3], 1

</llo_original>
